<compile_context>
chip_gen: v7x
topology: tpu7x:2x2x1
jax: 0.10.0
libtpu: 0.0.40
codegen_flags: <defaults>
</compile_context>

<pallas_src>
import functools

import jax
import jax.numpy as jnp
from jax.experimental import pallas as pl
from jax.experimental.pallas import tpu as pltpu

REPLICAS = 6
_BYPASS_BYTES = 64 * 1024  # below this output size, plain XLA is faster


def _act_kernel(x_ref, o_ref, *, use_tanh):
    # x_ref: (tb, tf) input tile; o_ref: (REPLICAS, tb, tf) output block.
    v = x_ref[...]
    if use_tanh:
        act = jnp.tanh(v)
    else:
        act = jnp.maximum(v, jnp.zeros((), v.dtype))  # dtype-matched zero
    # Replication folded into the output block: six full-tile, unmasked
    # stores into one VMEM buffer -> a single large writeback DMA per step.
    for k in range(REPLICAS):
        o_ref[k] = act


def _round_up(n, m):
    return (n + m - 1) // m * m


def _divisor_tile(total, unit, max_tile):
    """Largest multiple of `unit` that divides `total` (a multiple of `unit`)
    and does not exceed `max_tile`."""
    m = total // unit
    cap = max(1, min(m, max_tile // unit))
    for d in range(cap, 0, -1):
        if m % d == 0:
            return d * unit
    return unit


def _vmem_limit_bytes():
    """Per-generation VMEM budget: half of physical capacity (64 MiB on
    v5e/v6e, 32 MiB on v7x), with a conservative fallback."""
    try:
        cap = int(pltpu.get_tpu_info().vmem_capacity_bytes)
    except Exception:
        cap = 64 * 1024 * 1024
    return max(16 * 1024 * 1024, cap // 2)


def _choose_tiles(b_pad, f_pad, itemsize, tile_budget):
    """Byte-aware (tb, tf): double-buffered input + folded-replica output must
    fit `tile_budget`.  Lane dimension is maximised first (DMA efficiency),
    then the sublane/batch tile."""
    per_elem = 2 * (REPLICAS + 1) * itemsize  # in + 6x out, double-buffered
    max_elems = max(8 * 128, tile_budget // per_elem)
    tf = _divisor_tile(f_pad, 128, max(128, (max_elems // 8) // 128 * 128))
    tb = _divisor_tile(b_pad, 8, max(8, (max_elems // tf) // 8 * 8))

    # If everything collapsed into a single block but the problem is big,
    # split so the v7x megacore has >=2 parallel blocks to shard.
    out_bytes = REPLICAS * b_pad * f_pad * itemsize
    if b_pad // tb == 1 and f_pad // tf == 1 and out_bytes >= (4 << 20):
        if b_pad >= 16:
            tb = _divisor_tile(b_pad, 8, max(8, (b_pad // 2) // 8 * 8))
        elif f_pad >= 256:
            tf = _divisor_tile(f_pad, 128, max(128, (f_pad // 2) // 128 * 128))
    return tb, tf


def model_forward(x, *, force_pallas=False):
    """JAX/Pallas equivalent of Model.forward: (B, ...) -> (6*B, prod(...))."""
    B = x.shape[0]
    F = 1
    for d in x.shape[1:]:
        F *= d
    x2 = x.reshape(B, F)  # same as torch .view on a contiguous tensor
    itemsize = jnp.dtype(x2.dtype).itemsize

    # torch branch: tanh iff the concatenated result has shape exactly (6, 33),
    # i.e. a 2-D input of shape (1, 33); relu otherwise.
    use_tanh = (x.ndim == 2 and B == 1 and F == 33)

    out_bytes = REPLICAS * B * F * itemsize
    if out_bytes < _BYPASS_BYTES and not force_pallas:
        # Sub-vreg problems: pallas_call fixed cost dominates; let XLA fuse.
        y = jnp.broadcast_to(x2[None], (REPLICAS, B, F)).reshape(REPLICAS * B, F)
        return jnp.tanh(y) if use_tanh else jnp.maximum(y, jnp.zeros((), y.dtype))

    # Pad to lane/sublane-dense extents so every store is a full unmasked vst.
    b_pad = _round_up(B, 8)
    f_pad = _round_up(F, 128)
    if b_pad != B or f_pad != F:
        x2p = jnp.pad(x2, ((0, b_pad - B), (0, f_pad - F)))
    else:
        x2p = x2

    vmem_limit = _vmem_limit_bytes()
    tb, tf = _choose_tiles(b_pad, f_pad, itemsize, int(vmem_limit * 0.75))
    nb, nf = b_pad // tb, f_pad // tf

    kernel = functools.partial(_act_kernel, use_tanh=use_tanh)

    out3 = pl.pallas_call(
        kernel,
        out_shape=jax.ShapeDtypeStruct((REPLICAS, b_pad, f_pad), x2p.dtype),
        grid_spec=pl.GridSpec(
            grid=(nb, nf),
            in_specs=[pl.BlockSpec((tb, tf), lambda i, j: (i, j))],
            out_specs=pl.BlockSpec((REPLICAS, tb, tf), lambda i, j: (0, i, j)),
        ),
        compiler_params=pltpu.CompilerParams(
            dimension_semantics=("parallel", "parallel"),
            vmem_limit_bytes=vmem_limit,
        ),
    )(x2p)

    if b_pad != B or f_pad != F:
        out3 = out3[:, :B, :F]
    # Slab row (k, b) is torch row k*B + b: exactly cat([x]*6, 0).view(6*B, -1).
    return out3.reshape(REPLICAS * B, F)


if __name__ == "__main__":
    key = jax.random.PRNGKey(0)
    k1, k2, k3 = jax.random.split(key, 3)

    def ref_forward(xx):
        y = jnp.concatenate([xx] * REPLICAS, axis=0)
        flat = y.reshape(y.shape[0], -1)
        if y.ndim == 2 and y.shape == (6, 33):
            return jnp.tanh(flat)
        return jnp.maximum(flat, 0.0)

    # 1) The module's toy input (2, 3, 4): small-shape bypass by default,
    #    and the padded Pallas path when forced.
    x_small = jax.random.normal(k1, (2, 3, 4), dtype=jnp.float32)
    out_small = model_forward(x_small)
    out_small_pl = model_forward(x_small, force_pallas=True)
    jax.block_until_ready((out_small, out_small_pl))
    ref_small = ref_forward(x_small)
    assert out_small.shape == (12, 12), out_small.shape
    assert out_small_pl.shape == (12, 12), out_small_pl.shape
    assert jnp.allclose(out_small, ref_small, atol=1e-6)
    assert jnp.allclose(out_small_pl, ref_small, atol=1e-6)

    # 2) tanh branch: 2-D input (1, 33) -> y.shape == (6, 33).
    x_tanh = jax.random.normal(k2, (1, 33), dtype=jnp.float32)
    out_tanh = model_forward(x_tanh, force_pallas=True)
    jax.block_until_ready(out_tanh)
    assert out_tanh.shape == (6, 33), out_tanh.shape
    assert jnp.allclose(out_tanh, ref_forward(x_tanh), atol=1e-5)

    # 3) A larger (still small) shape that takes the Pallas path by default.
    x_big = jax.random.normal(k3, (128, 8, 48), dtype=jnp.float32)
    out_big = model_forward(x_big)
    jax.block_until_ready(out_big)
    assert out_big.shape == (768, 384), out_big.shape
    assert jnp.allclose(out_big, ref_forward(x_big), atol=1e-6)

    print("KERNEL_OK")
</pallas_src>

<mosaic_0001>
module attributes {stable_mosaic.version = 11 : i64} {
  func.func @_act_kernel(%arg0: i32, %arg1: i32, %arg2: memref<8x128xf32, #tpu.memory_space<vmem>>, %arg3: memref<6x8x128xf32, #tpu.memory_space<vmem>>) attributes {dimension_semantics = [#tpu.dimension_semantics<parallel>, #tpu.dimension_semantics<parallel>], iteration_bounds = array<i64: 1, 1>, scalar_prefetch = 0 : i64, scratch_operands = 0 : i64, tpu.core_type = #tpu.core_type<tc>, window_params = [{transform_indices = @transform_0, window_bounds = array<i64: 8, 128>}, {transform_indices = @transform_1, window_bounds = array<i64: 6, 8, 128>}]} {
    %c0 = arith.constant 0 : index
    %c0_0 = arith.constant 0 : index
    %0 = vector.load %arg2[%c0, %c0_0] : memref<8x128xf32, #tpu.memory_space<vmem>>, vector<8x128xf32>
    %cst = arith.constant 0.000000e+00 : f32
    %1 = vector.broadcast %cst : f32 to vector<8x128xf32>
    %2 = arith.maximumf %0, %1 : vector<8x128xf32>
    %c0_1 = arith.constant 0 : index
    %c0_2 = arith.constant 0 : index
    %c0_3 = arith.constant 0 : index
    %3 = vector.load %arg3[%c0_1, %c0_2, %c0_3] : memref<6x8x128xf32, #tpu.memory_space<vmem>>, vector<1x8x128xf32>
    %4 = vector.shape_cast %3 : vector<1x8x128xf32> to vector<8x128xf32>
    %5 = vector.shape_cast %2 : vector<8x128xf32> to vector<1x8x128xf32>
    tpu.vector_store %arg3[%c0_1, %c0_2, %c0_3], %5 {strides = array<i32>} : memref<6x8x128xf32, #tpu.memory_space<vmem>>, vector<1x8x128xf32>,
    %c1 = arith.constant 1 : index
    %c0_4 = arith.constant 0 : index
    %c0_5 = arith.constant 0 : index
    %6 = vector.load %arg3[%c1, %c0_4, %c0_5] : memref<6x8x128xf32, #tpu.memory_space<vmem>>, vector<1x8x128xf32>
    %7 = vector.shape_cast %6 : vector<1x8x128xf32> to vector<8x128xf32>
    %8 = vector.shape_cast %2 : vector<8x128xf32> to vector<1x8x128xf32>
    tpu.vector_store %arg3[%c1, %c0_4, %c0_5], %8 {strides = array<i32>} : memref<6x8x128xf32, #tpu.memory_space<vmem>>, vector<1x8x128xf32>,
    %c2 = arith.constant 2 : index
    %c0_6 = arith.constant 0 : index
    %c0_7 = arith.constant 0 : index
    %9 = vector.load %arg3[%c2, %c0_6, %c0_7] : memref<6x8x128xf32, #tpu.memory_space<vmem>>, vector<1x8x128xf32>
    %10 = vector.shape_cast %9 : vector<1x8x128xf32> to vector<8x128xf32>
    %11 = vector.shape_cast %2 : vector<8x128xf32> to vector<1x8x128xf32>
    tpu.vector_store %arg3[%c2, %c0_6, %c0_7], %11 {strides = array<i32>} : memref<6x8x128xf32, #tpu.memory_space<vmem>>, vector<1x8x128xf32>,
    %c3 = arith.constant 3 : index
    %c0_8 = arith.constant 0 : index
    %c0_9 = arith.constant 0 : index
    %12 = vector.load %arg3[%c3, %c0_8, %c0_9] : memref<6x8x128xf32, #tpu.memory_space<vmem>>, vector<1x8x128xf32>
    %13 = vector.shape_cast %12 : vector<1x8x128xf32> to vector<8x128xf32>
    %14 = vector.shape_cast %2 : vector<8x128xf32> to vector<1x8x128xf32>
    tpu.vector_store %arg3[%c3, %c0_8, %c0_9], %14 {strides = array<i32>} : memref<6x8x128xf32, #tpu.memory_space<vmem>>, vector<1x8x128xf32>,
    %c4 = arith.constant 4 : index
    %c0_10 = arith.constant 0 : index
    %c0_11 = arith.constant 0 : index
    %15 = vector.load %arg3[%c4, %c0_10, %c0_11] : memref<6x8x128xf32, #tpu.memory_space<vmem>>, vector<1x8x128xf32>
    %16 = vector.shape_cast %15 : vector<1x8x128xf32> to vector<8x128xf32>
    %17 = vector.shape_cast %2 : vector<8x128xf32> to vector<1x8x128xf32>
    tpu.vector_store %arg3[%c4, %c0_10, %c0_11], %17 {strides = array<i32>} : memref<6x8x128xf32, #tpu.memory_space<vmem>>, vector<1x8x128xf32>,
    %c5 = arith.constant 5 : index
    %c0_12 = arith.constant 0 : index
    %c0_13 = arith.constant 0 : index
    %18 = vector.load %arg3[%c5, %c0_12, %c0_13] : memref<6x8x128xf32, #tpu.memory_space<vmem>>, vector<1x8x128xf32>
    %19 = vector.shape_cast %18 : vector<1x8x128xf32> to vector<8x128xf32>
    %20 = vector.shape_cast %2 : vector<8x128xf32> to vector<1x8x128xf32>
    tpu.vector_store %arg3[%c5, %c0_12, %c0_13], %20 {strides = array<i32>} : memref<6x8x128xf32, #tpu.memory_space<vmem>>, vector<1x8x128xf32>,
    return
  }
  func.func @transform_0(%arg0: i32, %arg1: i32) -> (i32, i32) {
    %c0_i32 = arith.constant 0 : i32
    return %arg0, %arg1 : i32, i32
  }
  func.func @transform_1(%arg0: i32, %arg1: i32) -> (i32, i32, i32) {
    %c0_i32 = arith.constant 0 : i32
    %c0_i32_0 = arith.constant 0 : i32
    return %c0_i32, %arg0, %arg1 : i32, i32, i32
  }
}

</mosaic_0001>

<llo_original>
// kernel: tpu_custom_call.1
$region0: #{tpu_custom_call.1}
  #allocation0 [shape = 'u32[]', space=smem, size = 0x4, offset = 0x4, fixed_abs, tag = 'smem constant byte address 0x4 - core index']
  #allocation1 [shape = 'u32[144,128]{1,0:T(1,128)}', space=vmem, size = 0x12000, scoped, tag = 'internal scratch']
  %s0 = inlined_call_operand.hbm [shape: f32[8,128], index: 0, kind: input, shape index: {}]
  %s1 = inlined_call_operand.hbm [shape: f32[6,8,128], index: 1, kind: output, shape index: {}]
  %s2 = sld [smem:[#allocation0]]
  $region18: #{tpu_custom_call.1} parent=0
    _
  %s4 = ssub.s32 1, %s2
  %s5 = scalar_select 0, %s4, %s2
  $region1: #{tpu_custom_call.1} parent=0
    #allocation2 [shape = 'u8[4096]{0}', space=vmem, size = 0x1000, scoped, tag = 'input window, operand 0, single buffered']
    #allocation3 [shape = 's32[1]{0}', space=sflag, size = 0x4, scoped, tag = 'scoped memory for tpu_custom_call.1']
    #allocation4 [shape = 's32[1]{0}', space=sflag, size = 0x4, scoped, tag = 'scoped memory for tpu_custom_call.1']
    #allocation5 [shape = 'u8[24576]{0}', space=vmem, size = 0x6000, scoped, tag = 'output window, operand 0, single buffered']
    %6 = vsyncpa [#allocation3], 0
    %7 = vsyncpa [#allocation4], 0
    // Predicated region
    $region2: #{tpu_custom_call.1} parent=1 // pred_check
      _
    $region3: #{tpu_custom_call.1} parent=1 // pred_check_branch
      %9 = sbr.rel (0) target = $region5
    $region4: #{tpu_custom_call.1} parent=1 // pred_region
      %s11 = ssub.s32 128, 128
      %12 = vsyncadd [#allocation3], %s11
      %s14 = sshll.u32 [#allocation2], 4
      %s15 = int_to_ptr.vmem [resolvable:$true] %s14
      %17 = dma.hbm_to_vmem [thread:$0]  %s0, 128, %s15, [#allocation3]
    $region5: #{tpu_custom_call.1} parent=1 // pred_fallthru
      _
    // Predicated region
    $region6: #{tpu_custom_call.1} parent=1 // pred_check
      _
    $region7: #{tpu_custom_call.1} parent=1 // pred_check_branch
      %19 = sbr.rel (0) target = $region9
    $region8: #{tpu_custom_call.1} parent=1 // pred_region
      %20 = dma.done [#allocation3], 128
    $region9: #{tpu_custom_call.1} parent=1 // pred_fallthru
      _
    %v21 = vld [vmem:[#allocation2] sm:$0xff]
    %v22 = vmax.f32 %v21, 0.0
    %23 = vst [vmem:[#allocation5] sm:$0xff] %v22
    %s24 = scalar_lea.vmem [#allocation5], 8
    %25 = vst [vmem:[%s24] sm:$0xff] %v22
    %s26 = scalar_lea.vmem [#allocation5], 16
    %27 = vst [vmem:[%s26] sm:$0xff] %v22
    %s28 = scalar_lea.vmem [#allocation5], 24
    %29 = vst [vmem:[%s28] sm:$0xff] %v22
    %s30 = scalar_lea.vmem [#allocation5], 32
    %31 = vst [vmem:[%s30] sm:$0xff] %v22
    %s32 = scalar_lea.vmem [#allocation5], 40
    %33 = vst [vmem:[%s32] sm:$0xff] %v22
    // Predicated region
    $region10: #{tpu_custom_call.1} parent=1 // pred_check
      _
    $region11: #{tpu_custom_call.1} parent=1 // pred_check_branch
      %35 = sbr.rel (0) target = $region13
    $region12: #{tpu_custom_call.1} parent=1 // pred_region
      %s37 = ssub.s32 768, 768
      %38 = vsyncadd [#allocation4], %s37
      %s39 = sshll.u32 [#allocation5], 4
      %s40 = int_to_ptr.vmem [resolvable:$true] %s39
      %45 = dma.vmem_to_hbm [thread:$0]  %s40, 768, %s1, [#allocation4], 128, 128, 8
    $region13: #{tpu_custom_call.1} parent=1 // pred_fallthru
      _
    // Predicated region
    $region14: #{tpu_custom_call.1} parent=1 // pred_check
      _
    $region15: #{tpu_custom_call.1} parent=1 // pred_check_branch
      %47 = sbr.rel (0) target = $region17
    $region16: #{tpu_custom_call.1} parent=1 // pred_region
      %48 = dma.done [#allocation4], 768
    $region17: #{tpu_custom_call.1} parent=1 // pred_fallthru
      _
    %49 = vsyncpa [#allocation3], 1
    %50 = vsyncpa [#allocation4], 1

</llo_original>
